<compile_context>
chip_gen: v7x
topology: tpu7x:2x2x1
jax: 0.10.0
libtpu: 0.0.40
codegen_flags: <defaults>
</compile_context>

<pallas_src>
import functools

import jax
import jax.numpy as jnp
from jax.experimental import pallas as pl
from jax.experimental.pallas import tpu as pltpu


def _feaselect_kernel(cnt_ref, len_ref, feat_ref, out_ref, *, seq_len):
    # cnt_ref:  (num_batch_blocks,) int32 SMEM -- needed L-chunks per batch block (prefetched)
    # len_ref:  (TB, 1)       int32 VMEM      -- per-row valid lengths (clamped to <= seq_len)
    # feat_ref: (TB, TL, TD)  float VMEM      -- one (batch, seq, embed) tile
    # out_ref:  (TB, TD)      float VMEM      -- running-max accumulator / final output
    i = pl.program_id(0)
    l = pl.program_id(2)
    nl = pl.num_programs(2)
    needed = cnt_ref[i]

    @pl.when(l == 0)
    def _init():
        # -inf (not -10000) so fully-valid rows keep their exact max; the torch
        # -10000 floor is applied once in the finalize step below.
        out_ref[...] = jnp.full(out_ref.shape, -jnp.inf, out_ref.dtype)

    @pl.when(l < needed)
    def _compute():
        feat = feat_ref[...]                                           # (TB, TL, TD)
        TB, TL, _ = feat.shape
        lens = len_ref[...]                                            # (TB, 1) int32
        # Global sequence index of each row in this L-chunk; mask shape (TB, TL, 1).
        t_idx = l * TL + jax.lax.broadcasted_iota(jnp.int32, (TB, TL, 1), 1)
        valid = t_idx < lens[:, :, None]                               # (TB, TL, 1)
        masked = jnp.where(valid, feat, -jnp.inf)                      # only valid t count
        out_ref[...] = jnp.maximum(out_ref[...], jnp.max(masked, axis=1))

    @pl.when(l == nl - 1)
    def _finalize():
        lens = len_ref[...]                                            # (TB, 1)
        acc = out_ref[...]
        # Rows with any invalid position (lens < L) see torch's -10000 fill -> floor.
        acc = jnp.where(lens < seq_len,
                        jnp.maximum(acc, jnp.asarray(-10000.0, acc.dtype)),
                        acc)
        # Rows with length == 0 are zeroed (torch's post-sort masked_fill on row 0).
        out_ref[...] = jnp.where(lens >= 1, acc, 0).astype(out_ref.dtype)


def _chip_config():
    """Returns (feature-block byte budget, scoped vmem limit, megacore split flag)."""
    try:
        kind = jax.devices()[0].device_kind.lower()
    except Exception:
        kind = ""
    if "v7" in kind:
        # 3.2 TB/s HBM: big blocks amortize the ~0.35 us/step overhead; 64 MiB physical VMEM.
        return 8 * 1024 * 1024, 48 * 1024 * 1024, True
    if "v6" in kind:
        return 4 * 1024 * 1024, 64 * 1024 * 1024, False
    if "v5" in kind:
        # ~0.82 TB/s: 2 MiB blocks are already ~85% of roofline; byte-skip matters more.
        return 2 * 1024 * 1024, 32 * 1024 * 1024, False
    return 4 * 1024 * 1024, 32 * 1024 * 1024, False


def _pick_tiles(B, L, D, itemsize, budget, split_for_megacore):
    # Batch / sublane tile: multiple of 8 (dense output sublanes) or full B.
    TB = B if B <= 8 else min(64, (B // 8) * 8)

    # Lane tile: prefer TD = D so each batch row's chunk is one contiguous HBM run and
    # chunk-skip drops whole feature rows.  Only split D (128-lane multiples) when even
    # a minimal (TB, 8, D) block would blow the budget.
    if D % 128 != 0 or TB * 8 * D * itemsize <= budget:
        TD = D
    else:
        max_td = max(128, (budget // (TB * 8 * itemsize)) // 128 * 128)
        TD = min(D, max_td)

    # v7x megacore: both leading grid axes are "parallel"; ensure they give >= 2 blocks
    # so the second TensorCore is not idle.
    if split_for_megacore and pl.cdiv(B, TB) * pl.cdiv(D, TD) == 1:
        if B > 8:
            TB = max(8, ((B // 2 + 7) // 8) * 8)
        elif D % 128 == 0 and D >= 256:
            TD = max(128, (D // 2 // 128) * 128)

    # Sequence tile: budget the (TB, TL, TD) block (double-buffered by Pallas),
    # multiple of 8 or full L.
    max_tl = max(8, budget // (TB * TD * itemsize))
    TL = L if L <= max_tl else max(8, (max_tl // 8) * 8)
    return TB, TL, TD


def feaselect_forward(features, lengths, block_sizes=None):
    """features: (B, L, D) float; lengths: (B,) int. Returns (pooled (B, D), None)."""
    B, L, D = features.shape
    itemsize = features.dtype.itemsize
    budget, vmem_limit, megacore = _chip_config()
    if block_sizes is None:
        TB, TL, TD = _pick_tiles(B, L, D, itemsize, budget, megacore)
    else:
        TB, TL, TD = block_sizes

    nb, nd, nl = pl.cdiv(B, TB), pl.cdiv(D, TD), pl.cdiv(L, TL)

    # Clamp lengths to L (positions beyond L never exist); (B, 1) layout for VMEM.
    lens_i32 = jnp.minimum(lengths.astype(jnp.int32), L)
    lengths2d = lens_i32.reshape(B, 1)

    # Scalar-prefetched per-batch-block chunk counts: grid steps l >= counts[i] are fully
    # padded, so their feature DMA is skipped (index_map repeats the previous block index)
    # and their compute is skipped via pl.when.
    lens_pad = jnp.pad(lens_i32, (0, nb * TB - B))
    block_max = jnp.max(lens_pad.reshape(nb, TB), axis=1)
    chunk_counts = ((block_max + TL - 1) // TL).astype(jnp.int32)

    def _feat_index(i, j, l, cnt):
        last = jnp.maximum(cnt[i] - 1, 0)
        return (i, jnp.minimum(l, last), j)

    cost = pl.CostEstimate(
        flops=2 * B * L * D,
        transcendentals=0,
        bytes_accessed=B * L * D * itemsize + B * D * itemsize + B * 8,
    )

    pooled = pl.pallas_call(
        functools.partial(_feaselect_kernel, seq_len=L),
        out_shape=jax.ShapeDtypeStruct((B, D), features.dtype),
        grid_spec=pltpu.PrefetchScalarGridSpec(
            num_scalar_prefetch=1,
            grid=(nb, nd, nl),
            in_specs=[
                pl.BlockSpec((TB, 1), lambda i, j, l, cnt: (i, 0)),        # lengths
                pl.BlockSpec((TB, TL, TD), _feat_index),                   # features
            ],
            out_specs=pl.BlockSpec((TB, TD), lambda i, j, l, cnt: (i, j)),
        ),
        compiler_params=pltpu.CompilerParams(
            dimension_semantics=("parallel", "parallel", "arbitrary"),
            vmem_limit_bytes=vmem_limit,
        ),
        cost_estimate=cost,
    )(chunk_counts, lengths2d, features)

    pool_weights = None
    return pooled, pool_weights


def feaselect_reference(features, lengths):
    """Pure-JAX reference mirroring the PyTorch forward (sort-based)."""
    B, L, D = features.shape
    t_idx = jnp.arange(L)[None, :, None]                       # (1, L, 1)
    mask = t_idx < lengths.astype(jnp.int32)[:, None, None]    # (B, L, 1)
    masked = jnp.where(mask, features, -10000.0)
    srt = -jnp.sort(-masked, axis=1)                            # descending sort over t
    srt = jnp.where(mask, srt, 0.0)
    return srt[:, 0, :]


if __name__ == "__main__":
    key = jax.random.PRNGKey(0)
    k1, k2, k3 = jax.random.split(key, 3)

    # Test 1: small shapes consistent with the module (single grid step).
    B, L, D = 2, 8, 32
    features = jax.random.normal(k1, (B, L, D), dtype=jnp.float32)
    lengths = jnp.array([5, 8], dtype=jnp.int32)
    pooled, pool_weights = feaselect_forward(features, lengths)
    pooled = jax.block_until_ready(pooled)
    ref = feaselect_reference(features, lengths)
    assert pooled.shape == (B, D)
    assert pool_weights is None
    assert jnp.allclose(pooled, ref, atol=1e-6), "mismatch vs reference (small)"

    # Test 2: forced small tiles to exercise multi-block grid, L chunking, and the
    # scalar-prefetch chunk-skip path (block 0 needs 4/7 chunks, block 1 needs 7/7).
    B2, L2, D2 = 16, 200, 256
    features2 = jax.random.normal(k2, (B2, L2, D2), dtype=jnp.float32)
    lengths2 = jnp.array(
        [0, 1, 7, 8, 50, 100, 127, 128, 129, 150, 199, 200, 200, 64, 32, 16],
        dtype=jnp.int32,
    )
    pooled2, _ = feaselect_forward(features2, lengths2, block_sizes=(8, 32, 128))
    pooled2 = jax.block_until_ready(pooled2)
    ref2 = feaselect_reference(features2, lengths2)
    assert pooled2.shape == (B2, D2)
    assert jnp.allclose(pooled2, ref2, atol=1e-6), "mismatch vs reference (forced tiles)"

    # Test 2b: same shape through the auto-tiling path.
    pooled2b, _ = feaselect_forward(features2, lengths2)
    pooled2b = jax.block_until_ready(pooled2b)
    assert jnp.allclose(pooled2b, ref2, atol=1e-6), "mismatch vs reference (auto tiles)"

    # Test 3: features far below -10000 exercise the -inf accumulator + -10000 floor
    # logic (fully-valid rows keep their exact max; partially-valid rows floor at -10000).
    B3, L3, D3 = 4, 16, 128
    features3 = jax.random.normal(k3, (B3, L3, D3), dtype=jnp.float32) - 20000.0
    lengths3 = jnp.array([0, 5, 16, 12], dtype=jnp.int32)
    pooled3, _ = feaselect_forward(features3, lengths3)
    pooled3 = jax.block_until_ready(pooled3)
    ref3 = feaselect_reference(features3, lengths3)
    assert jnp.allclose(pooled3, ref3, atol=1e-6), "mismatch vs reference (below -10000)"

    print("KERNEL_OK")
</pallas_src>

<mosaic_0001>
module attributes {stable_mosaic.version = 11 : i64} {
  func.func @_feaselect_kernel(%arg0: i32, %arg1: i32, %arg2: i32, %arg3: memref<1xi32, #tpu.memory_space<smem>>, %arg4: memref<2x1xi32, #tpu.memory_space<vmem>>, %arg5: memref<2x8x32xf32, #tpu.memory_space<vmem>>, %arg6: memref<2x32xf32, #tpu.memory_space<vmem>>) attributes {dimension_semantics = [#tpu.dimension_semantics<parallel>, #tpu.dimension_semantics<parallel>, #tpu.dimension_semantics<arbitrary>], iteration_bounds = array<i64: 1, 1, 1>, scalar_prefetch = 1 : i64, scratch_operands = 0 : i64, tpu.core_type = #tpu.core_type<tc>, window_params = [{transform_indices = @transform_0, window_bounds = array<i64: 2, 1>}, {transform_indices = @transform_1, window_bounds = array<i64: 2, 8, 32>}, {transform_indices = @transform_2, window_bounds = array<i64: 2, 32>}]} {
    %0 = arith.index_cast %arg0 : i32 to index
    %1 = memref.load %arg3[%0] : memref<1xi32, #tpu.memory_space<smem>>
    %c0_i32 = arith.constant 0 : i32
    %2 = arith.cmpi eq, %arg2, %c0_i32 : i32
    %3 = arith.extui %2 : i1 to i32
    %c0_i32_0 = arith.constant 0 : i32
    %4 = arith.cmpi ne, %3, %c0_i32_0 : i32
    scf.if %4 {
      %cst = arith.constant 0xFF800000 : f32
      %11 = vector.broadcast %cst : f32 to vector<2x32xf32>
      %c0 = arith.constant 0 : index
      %c0_4 = arith.constant 0 : index
      %12 = vector.load %arg6[%c0, %c0_4] : memref<2x32xf32, #tpu.memory_space<vmem>>, vector<2x32xf32>
      tpu.vector_store %arg6[%c0, %c0_4], %11 {strides = array<i32>} : memref<2x32xf32, #tpu.memory_space<vmem>>, vector<2x32xf32>,
    } else {
    }
    %5 = arith.cmpi slt, %arg2, %1 : i32
    %6 = arith.extui %5 : i1 to i32
    %c0_i32_1 = arith.constant 0 : i32
    %7 = arith.cmpi ne, %6, %c0_i32_1 : i32
    scf.if %7 {
      %c0 = arith.constant 0 : index
      %c0_4 = arith.constant 0 : index
      %c0_5 = arith.constant 0 : index
      %11 = vector.load %arg5[%c0, %c0_4, %c0_5] : memref<2x8x32xf32, #tpu.memory_space<vmem>>, vector<2x8x32xf32>
      %c0_6 = arith.constant 0 : index
      %c0_7 = arith.constant 0 : index
      %12 = vector.load %arg4[%c0_6, %c0_7] : memref<2x1xi32, #tpu.memory_space<vmem>>, vector<2x1xi32>
      %c8_i32 = arith.constant 8 : i32
      %13 = arith.muli %arg2, %c8_i32 : i32
      %14 = tpu.iota {dimensions = array<i32: 1>} : vector<2x8x1xi32>
      %15 = vector.broadcast %13 : i32 to vector<2x8x1xi32>
      %16 = arith.addi %15, %14 : vector<2x8x1xi32>
      %17 = vector.shape_cast %12 : vector<2x1xi32> to vector<2x1x1xi32>
      %18 = vector.broadcast %17 : vector<2x1x1xi32> to vector<2x8x1xi32>
      %19 = arith.cmpi slt, %16, %18 : vector<2x8x1xi32>
      %cst = arith.constant 0xFF800000 : f32
      %20 = vector.shape_cast %19 : vector<2x8x1xi1> to vector<2x8x1xi1>
      %21 = vector.broadcast %20 : vector<2x8x1xi1> to vector<2x8x32xi1>
      %22 = vector.broadcast %cst : f32 to vector<2x8x32xf32>
      %23 = arith.select %21, %11, %22 : vector<2x8x32xi1>, vector<2x8x32xf32>
      %c0_8 = arith.constant 0 : index
      %c0_9 = arith.constant 0 : index
      %24 = vector.load %arg6[%c0_8, %c0_9] : memref<2x32xf32, #tpu.memory_space<vmem>>, vector<2x32xf32>
      %cst_10 = arith.constant dense<0xFF800000> : vector<2x32xf32>
      %25 = vector.multi_reduction <maximumf>, %23, %cst_10 [1] : vector<2x8x32xf32> to vector<2x32xf32>
      %26 = arith.maximumf %24, %25 : vector<2x32xf32>
      %c0_11 = arith.constant 0 : index
      %c0_12 = arith.constant 0 : index
      %27 = vector.load %arg6[%c0_11, %c0_12] : memref<2x32xf32, #tpu.memory_space<vmem>>, vector<2x32xf32>
      tpu.vector_store %arg6[%c0_11, %c0_12], %26 {strides = array<i32>} : memref<2x32xf32, #tpu.memory_space<vmem>>, vector<2x32xf32>,
    } else {
    }
    %c0_i32_2 = arith.constant 0 : i32
    %8 = arith.cmpi eq, %arg2, %c0_i32_2 : i32
    %9 = arith.extui %8 : i1 to i32
    %c0_i32_3 = arith.constant 0 : i32
    %10 = arith.cmpi ne, %9, %c0_i32_3 : i32
    scf.if %10 {
      %c0 = arith.constant 0 : index
      %c0_4 = arith.constant 0 : index
      %11 = vector.load %arg4[%c0, %c0_4] : memref<2x1xi32, #tpu.memory_space<vmem>>, vector<2x1xi32>
      %c0_5 = arith.constant 0 : index
      %c0_6 = arith.constant 0 : index
      %12 = vector.load %arg6[%c0_5, %c0_6] : memref<2x32xf32, #tpu.memory_space<vmem>>, vector<2x32xf32>
      %c8_i32 = arith.constant 8 : i32
      %13 = vector.broadcast %c8_i32 : i32 to vector<2x1xi32>
      %14 = arith.cmpi slt, %11, %13 : vector<2x1xi32>
      %cst = arith.constant -1.000000e+04 : f32
      %15 = vector.broadcast %cst : f32 to vector<2x32xf32>
      %16 = arith.maximumf %12, %15 : vector<2x32xf32>
      %17 = vector.shape_cast %14 : vector<2x1xi1> to vector<2x1xi1>
      %18 = vector.broadcast %17 : vector<2x1xi1> to vector<2x32xi1>
      %19 = arith.select %18, %16, %12 : vector<2x32xi1>, vector<2x32xf32>
      %c1_i32 = arith.constant 1 : i32
      %20 = vector.broadcast %c1_i32 : i32 to vector<2x1xi32>
      %21 = arith.cmpi sge, %11, %20 : vector<2x1xi32>
      %c0_i32_7 = arith.constant 0 : i32
      %22 = arith.sitofp %c0_i32_7 : i32 to f32
      %23 = vector.shape_cast %21 : vector<2x1xi1> to vector<2x1xi1>
      %24 = vector.broadcast %23 : vector<2x1xi1> to vector<2x32xi1>
      %25 = vector.broadcast %22 : f32 to vector<2x32xf32>
      %26 = arith.select %24, %19, %25 : vector<2x32xi1>, vector<2x32xf32>
      %c0_8 = arith.constant 0 : index
      %c0_9 = arith.constant 0 : index
      %27 = vector.load %arg6[%c0_8, %c0_9] : memref<2x32xf32, #tpu.memory_space<vmem>>, vector<2x32xf32>
      tpu.vector_store %arg6[%c0_8, %c0_9], %26 {strides = array<i32>} : memref<2x32xf32, #tpu.memory_space<vmem>>, vector<2x32xf32>,
    } else {
    }
    return
  }
  func.func @transform_0(%arg0: i32, %arg1: i32, %arg2: i32, %arg3: memref<1xi32, #tpu.memory_space<smem>>) -> (i32, i32) {
    %c0_i32 = arith.constant 0 : i32
    %c0_i32_0 = arith.constant 0 : i32
    return %arg0, %c0_i32 : i32, i32
  }
  func.func @transform_1(%arg0: i32, %arg1: i32, %arg2: i32, %arg3: memref<1xi32, #tpu.memory_space<smem>>) -> (i32, i32, i32) {
    %0 = arith.index_cast %arg0 : i32 to index
    %1 = memref.load %arg3[%0] : memref<1xi32, #tpu.memory_space<smem>>
    %c1_i32 = arith.constant 1 : i32
    %2 = arith.subi %1, %c1_i32 : i32
    %c0_i32 = arith.constant 0 : i32
    %3 = arith.maxsi %2, %c0_i32 : i32
    %4 = arith.minsi %arg2, %3 : i32
    %c0_i32_0 = arith.constant 0 : i32
    return %arg0, %4, %arg1 : i32, i32, i32
  }
  func.func @transform_2(%arg0: i32, %arg1: i32, %arg2: i32, %arg3: memref<1xi32, #tpu.memory_space<smem>>) -> (i32, i32) {
    %c0_i32 = arith.constant 0 : i32
    return %arg0, %arg1 : i32, i32
  }
}

</mosaic_0001>

<llo_original>
// kernel: tpu_custom_call.1
$region0: #{tpu_custom_call.1}
  #allocation0 [shape = 'u32[]', space=smem, size = 0x4, offset = 0x4, fixed_abs, tag = 'smem constant byte address 0x4 - core index']
  #allocation1 [shape = 'u32[144,128]{1,0:T(1,128)}', space=vmem, size = 0x12000, scoped, tag = 'internal scratch']
  #allocation2 [shape = 's32[1]{0}', space=sflag, size = 0x4, scoped, tag = 'scoped memory for tpu_custom_call.1']
  #allocation3 [shape = 's32[1]{0:T(128)S(6)}', space=smem, size = 0x200, scoped, tag = 'prefetched SMEM operand 0']
  %s0 = inlined_call_operand.<no memory space> [shape: s32[1], index: 0, kind: input, shape index: {}]
  %s1 = inlined_call_operand.vmem [shape: s32[2,1], index: 1, kind: input, shape index: {}]
  %s2 = inlined_call_operand.hbm [shape: f32[2,8,32], index: 2, kind: input, shape index: {}]
  %s3 = inlined_call_operand.hbm [shape: f32[2,32], index: 3, kind: output, shape index: {}]
  %s4 = sld [smem:[#allocation0]]
  $region34: #{tpu_custom_call.1} parent=0
    _
  %s6 = ssub.s32 1, %s4
  %s7 = scalar_select 0, %s6, %s4
  %8 = sst [smem:[#allocation3]] %s0
  $region1: #{tpu_custom_call.1} parent=0
    #allocation4 [shape = 'u8[8192]{0}', space=vmem, size = 0x2000, scoped, tag = 'input window, operand 2, single buffered']
    #allocation5 [shape = 's32[1]{0}', space=sflag, size = 0x4, scoped, tag = 'scoped memory for tpu_custom_call.1']
    #allocation6 [shape = 's32[1]{0}', space=sflag, size = 0x4, scoped, tag = 'scoped memory for tpu_custom_call.1']
    #allocation7 [shape = 'u8[1024]{0}', space=vmem, size = 0x400, scoped, tag = 'output window, operand 0, single buffered']
    %9 = vsyncpa [#allocation5], 0
    %10 = vsyncpa [#allocation6], 0
    // Predicated region
    $region2: #{tpu_custom_call.1} parent=1 // pred_check
      _
    $region3: #{tpu_custom_call.1} parent=1 // pred_check_branch
      %12 = sbr.rel (0) target = $region5
    $region4: #{tpu_custom_call.1} parent=1 // pred_region
      _
    $region5: #{tpu_custom_call.1} parent=1 // pred_fallthru
      _
    // Predicated region
    $region6: #{tpu_custom_call.1} parent=1 // pred_check
      _
    $region7: #{tpu_custom_call.1} parent=1 // pred_check_branch
      %14 = sbr.rel (0) target = $region9
    $region8: #{tpu_custom_call.1} parent=1 // pred_region
      %s15 = sld [smem:[#allocation3]]
      %s16 = ssub.s32 %s15, 1
      %p17 = scmp.gt.s32.totalorder %s16, 0
      %s18 = scalar_select %p17, %s16, 0
      %p19 = scmp.lt.s32.totalorder 0, %s18
      %s20 = scalar_select %p19, 0, %s18
      %s22 = ssub.s32 256, 256
      %23 = vsyncadd [#allocation5], %s22
      %s24 = smul.addr %s20, 128
      %s25 = scalar_lea.hbm %s2, %s24
      %s26 = sshll.u32 [#allocation4], 4
      %s27 = int_to_ptr.vmem [resolvable:$true] %s26
      %32 = dma.hbm_to_vmem [thread:$0]  %s25, 256, %s27, [#allocation5], 128, 128, 8
    $region9: #{tpu_custom_call.1} parent=1 // pred_fallthru
      _
    // Predicated region
    $region10: #{tpu_custom_call.1} parent=1 // pred_check
      _
    $region11: #{tpu_custom_call.1} parent=1 // pred_check_branch
      %34 = sbr.rel (0) target = $region13
    $region12: #{tpu_custom_call.1} parent=1 // pred_region
      %35 = dma.done [#allocation5], 256
    $region13: #{tpu_custom_call.1} parent=1 // pred_fallthru
      _
    %s36 = sld [smem:[#allocation3]]
    %s37 = ssub.s32 %s36, 1
    %p38 = scmp.gt.s32.totalorder %s37, 0
    %s39 = scalar_select %p38, %s37, 0
    %p40 = scmp.lt.s32.totalorder 0, %s39
    %s41 = scalar_select %p40, 0, %s39
    %s42 = sld [smem:[#allocation3]]
    %p43 = scmp.eq.s32.totalorder 0, 0
    // Predicated region
    $region14: #{tpu_custom_call.1} parent=1 // pred_check
      %p44 = pneg %p43
    $region15: #{tpu_custom_call.1} parent=1 // pred_check_branch
      %46 = sbr.rel (%p44) target = $region17
    $region16: #{tpu_custom_call.1} parent=1 // pred_region
      %vm47 = vcmask 254976
      %48 = vst.msk [vmem:[#allocation7] sm:$0x3] %vm47, -inf
    $region17: #{tpu_custom_call.1} parent=1 // pred_fallthru
      _
    %p49 = scmp.lt.s32.totalorder 0, %s42
    // Predicated region
    $region18: #{tpu_custom_call.1} parent=1 // pred_check
      %p50 = pneg %p49
    $region19: #{tpu_custom_call.1} parent=1 // pred_check_branch
      %52 = sbr.rel (%p50) target = $region21
    $region20: #{tpu_custom_call.1} parent=1 // pred_region
      %v53 = vld [vmem:[#allocation4] sm:$0xff]
      %v54 = vld [vmem:[#allocation4 + $0x8] sm:$0xff]
      %v55 = vld [vmem:[%s1] sm:$0x3]
      %s56 = smul.u32 0, 8
      %v57 = vlaneseq
      %v58 = vshrl.u32 %v57, 7
      %v59 = vstv %s56
      %v60 = vadd.s32 %v59, %v58
      %v62 = vunpack.c.l.s4 1966171168
      %v63 = vunpack.c.0.s8 %v62
      %v64 = vlaneseq
      %v65 = vshrl.u32 %v64, 7
      %v66 = vsub.s32 %v63, %v65
      %v67 = vrot.slane %v55, %v66
      %v68 = vcombine.high %v67, %v67
      %v70 = vunpack.c.l.s4 1966171168
      %v71 = vunpack.c.0.s8 %v70
      %v72 = vlaneseq
      %v73 = vshrl.u32 %v72, 7
      %v74 = vsub.s32 %v71, %v73
      %v75 = vrot.slane %v67, %v74
      %v77 = vunpack.c.l.s4 1966171168
      %v78 = vunpack.c.0.s8 %v77
      %v79 = vlaneseq
      %v80 = vshrl.u32 %v79, 7
      %v81 = vsub.s32 %v78, %v80
      %v82 = vrot.slane %v68, %v81
      %v83 = vlaneseq
      %v84 = vshrl.u32 %v83, 7
      %v85 = vsub.s32 0, %v84
      %v86 = vrot.slane %v75, %v85
      %v87 = vlaneseq
      %v88 = vshrl.u32 %v87, 7
      %v89 = vsub.s32 0, %v88
      %v90 = vrot.slane %v82, %v89
      %vm91 = vcmp.lt.s32.totalorder %v60, %v86
      %vm92 = vcmp.lt.s32.totalorder %v60, %v90
      %v93 = vsel %vm91, 1, 0
      %v94 = vsel %vm92, 1, 0
      %95 = vset.pattern.permute.xlu0 0
      %96 = vperm.xlu0 %95, %v93
      %v97 = vpop.permute.xlu0 %96
      %98 = vset.pattern.permute.xlu0 0
      %99 = vperm.xlu0 %98, %v94
      %v100 = vpop.permute.xlu0 %99
      %vm101 = vcmp.eq.s32.totalorder %v97, 1
      %vm102 = vcmp.eq.s32.totalorder %v100, 1
      %v103 = vsel %vm101, %v53, -inf
      %v104 = vsel %vm102, %v54, -inf
      %v105 = vld [vmem:[#allocation7] sm:$0x3]
      %vm106 = vcmask 261120
      %v107 = vsel %vm106, %v103, -inf
      %v108 = vrot.slane %v107, 4
      %v109 = vmax.f32 %v107, %v108
      %v110 = vrot.slane %v109, 2
      %v111 = vmax.f32 %v109, %v110
      %v112 = vrot.slane %v111, 1
      %v113 = vmax.f32 %v111, %v112
      %v114 = vsel %vm106, %v104, -inf
      %v115 = vrot.slane %v114, 4
      %v116 = vmax.f32 %v114, %v115
      %v117 = vrot.slane %v116, 2
      %v118 = vmax.f32 %v116, %v117
      %v119 = vrot.slane %v118, 1
      %v120 = vmax.f32 %v118, %v119
      %vm123 = vcmask 1041409
      %v124 = vsel %vm123, %v120, %v113
      %v126 = vmax.f32 %v105, %v124
      %vm127 = vcmask 254976
      %128 = vst.msk [vmem:[#allocation7] sm:$0x3] %vm127, %v126
    $region21: #{tpu_custom_call.1} parent=1 // pred_fallthru
      _
    // Predicated region
    $region22: #{tpu_custom_call.1} parent=1 // pred_check
      %p129 = pneg %p43
    $region23: #{tpu_custom_call.1} parent=1 // pred_check_branch
      %131 = sbr.rel (%p129) target = $region25
    $region24: #{tpu_custom_call.1} parent=1 // pred_region
      %v132 = vld [vmem:[%s1] sm:$0x3]
      %v133 = vld [vmem:[#allocation7] sm:$0x3]
      %vm134 = vcmp.lt.s32.totalorder %v132, 8
      %v135 = vmax.f32 %v133, -10000.0
      %v136 = vsel %vm134, 1, 0
      %137 = vset.pattern.permute.xlu0 0
      %138 = vperm.xlu0 %137, %v136
      %v139 = vpop.permute.xlu0 %138
      %vm140 = vcmp.eq.s32.totalorder %v139, 1
      %v141 = vsel %vm140, %v135, %v133
      %vm142 = vcmp.ge.s32.totalorder %v132, 1
      %v143 = vsel %vm142, 1, 0
      %144 = vset.pattern.permute.xlu0 0
      %145 = vperm.xlu0 %144, %v143
      %v146 = vpop.permute.xlu0 %145
      %vm147 = vcmp.eq.s32.totalorder %v146, 1
      %v148 = vsel %vm147, %v141, 0.0
      %vm149 = vcmask 254976
      %150 = vst.msk [vmem:[#allocation7] sm:$0x3] %vm149, %v148
    $region25: #{tpu_custom_call.1} parent=1 // pred_fallthru
      _
    // Predicated region
    $region26: #{tpu_custom_call.1} parent=1 // pred_check
      _
    $region27: #{tpu_custom_call.1} parent=1 // pred_check_branch
      %152 = sbr.rel (0) target = $region29
    $region28: #{tpu_custom_call.1} parent=1 // pred_region
      %s154 = ssub.s32 32, 32
      %155 = vsyncadd [#allocation6], %s154
      %s157 = sshll.u32 [#allocation7], 4
      %s158 = int_to_ptr.vmem [resolvable:$true] %s157
      %160 = dma.vmem_to_hbm [thread:$0]  %s158, 32, %s3, [#allocation6]
    $region29: #{tpu_custom_call.1} parent=1 // pred_fallthru
      _
    // Predicated region
    $region30: #{tpu_custom_call.1} parent=1 // pred_check
      _
    $region31: #{tpu_custom_call.1} parent=1 // pred_check_branch
      %162 = sbr.rel (0) target = $region33
    $region32: #{tpu_custom_call.1} parent=1 // pred_region
      %163 = dma.done [#allocation6], 32
    $region33: #{tpu_custom_call.1} parent=1 // pred_fallthru
      _
    %164 = vsyncpa [#allocation5], 1
    %165 = vsyncpa [#allocation6], 1

</llo_original>
